<compile_context>
chip_gen: v6e
topology: v6e:2x2x1
jax: 0.10.0
libtpu: 0.0.40
codegen_flags: <defaults>
</compile_context>

<pallas_src>
import functools
import math

import jax
import jax.numpy as jnp
from jax.experimental import pallas as pl
from jax.experimental.pallas import tpu as pltpu

_NEG_SLOPE = 0.2
_MASK_VAL = -1e30


# --------------------------------------------------------------------------
# Pallas kernel 1: linear projection + per-node head scores (tiny, ungridded).
# --------------------------------------------------------------------------
def _proj_kernel(x_ref, w_ref, asrc_ref, adst_ref,
                 xw_ref, asrct_ref, adst_out_ref):
    xw = jnp.dot(x_ref[...], w_ref[...], preferred_element_type=jnp.float32)
    xw_ref[...] = xw                                           # [N, H*C]
    # a_srcT[h, j] = sum_f Asrc[f, h] * xw[j, f]               -> [H, N]
    asrct_ref[...] = jax.lax.dot_general(
        asrc_ref[...], xw, (((0,), (1,)), ((), ())),
        preferred_element_type=jnp.float32)
    # a_dst[i, h] = sum_f xw[i, f] * Adst[f, h]                -> [N, H]
    adst_out_ref[...] = jnp.dot(xw, adst_ref[...],
                                preferred_element_type=jnp.float32)


# --------------------------------------------------------------------------
# Pallas kernel 2: dense masked attention + aggregation for one dst-row tile.
# Outputs: aggregated features, per-row softmax max (m) and sum (s) per head.
# --------------------------------------------------------------------------
def _attn_kernel(xw_ref, asrct_ref, adst_ref, adj_ref, eattr_ref, *rest,
                 heads, out_ch, use_atten):
    if use_atten:
        eatten_ref, k_ref, bias_ref, out_ref, m_ref, s_ref = rest
    else:
        k_ref, bias_ref, out_ref, m_ref, s_ref = rest

    xw = xw_ref[...]                           # [N, H*C], resident across tiles
    a_src = asrct_ref[...]                     # [H, N],   resident
    a_dst = adst_ref[...]                      # [T, H]
    # int8 adjacency -> additive softmax mask; hoisted out of the head loop.
    negb = jnp.where(adj_ref[...] > 0,
                     jnp.float32(0.0), jnp.float32(_MASK_VAL))   # [T, N]
    eterm = eattr_ref[...].astype(jnp.float32)                   # [T, N]
    if use_atten:
        eatten = eatten_ref[...].astype(jnp.float32)             # [T, N]
    bias = bias_ref[...]                                         # [1, H*C]

    outs, ms, ss = [], [], []
    # TODO(synk): attention dropout (training mode) not implemented; eval mode.
    # TODO(synk): head loop is statically unrolled (H in {4, 2}); per-head
    # [T, N] temporaries are accounted for in the tile/VMEM sizing instead of
    # a dynamic-lane-sliced fori_loop (avoids dynamic minor-dim slicing).
    for h in range(heads):
        hs, he = h * out_ch, (h + 1) * out_ch
        # raw logits: alpha_dst[i] + alpha_src[j] + k_edge[h] * eattr[i, j]
        raw = (a_dst[:, h:h + 1] + a_src[h:h + 1, :]) + k_ref[h] * eterm
        leak = jnp.maximum(raw, _NEG_SLOPE * raw)        # leaky_relu, 2 VPU ops
        masked = leak + negb
        m = jnp.max(masked, axis=1, keepdims=True)
        e = jnp.exp(masked - m)          # non-edges underflow to exactly 0
        s = jnp.sum(e, axis=1, keepdims=True)
        p = e * eatten if use_atten else e
        agg = jnp.dot(p, xw[:, hs:he], preferred_element_type=jnp.float32)
        # Normalize after the matmul on the small [T, C] result; exact division
        # so it matches the host-side per-edge alpha reconstruction.
        outs.append(agg / jnp.maximum(s, 1e-16))
        ms.append(m)
        ss.append(s)

    # Single lane-dense stores per tile; bias folded into the final store.
    out_ref[...] = jnp.concatenate(outs, axis=1) + bias
    m_ref[...] = jnp.concatenate(ms, axis=1)
    s_ref[...] = jnp.concatenate(ss, axis=1)


# --------------------------------------------------------------------------
# Tiling / VMEM helpers (generation-aware).
# --------------------------------------------------------------------------
def _vmem_capacity():
    try:
        return int(pltpu.get_tpu_info().vmem_capacity_bytes)
    except Exception:
        return 64 << 20   # conservative default = v7x per-TensorCore VMEM


def _pick_tile(n, cap):
    if n <= 512:
        return n
    big_vmem = cap >= (96 << 20)               # v5e/v6e: 128 MiB; v7x: 64 MiB
    tile = 512 if big_vmem else 256
    budget = (40 << 20) if big_vmem else (14 << 20)
    # per-row bytes: double-buffered streamed slabs (i8 mask + bf16 eattr
    # [+ bf16 eatten]) plus ~4 live f32 [tile, n] head-loop temporaries.
    per_row = 2 * (1 + 2 + 2) * n + 4 * 4 * n
    while tile > 32 and tile * per_row > budget:
        tile //= 2
    return tile


def _vmem_limit(n, tile, hc, heads, cap, use_atten):
    stream = tile * n * (1 + 2 + (2 if use_atten else 0))      # i8 + bf16 slabs
    per_step = stream + 4 * tile * (hc + 3 * heads)            # + a_dst/outs
    resident = 4 * (n * hc + heads * n + hc + heads)
    temps = 4 * 4 * tile * n                                   # head-loop temps
    est = 2 * per_step + resident + temps + (8 << 20)
    return int(min(int(cap * 0.72), max(est, 16 << 20)))


# --------------------------------------------------------------------------
# One GATConv layer: projection kernel + tiled attention kernel.
# --------------------------------------------------------------------------
def gat_conv_layer(x, adj_i8, eattr_bf, eatten_bf, params, heads, out_ch,
                   vmem_cap):
    n = x.shape[0]
    hc = heads * out_ch
    w = params["lin_w"]                     # [Fin, H*C]
    att_src = params["att_src"]             # [H, C]
    att_dst = params["att_dst"]             # [H, C]
    att_edge = params["att_edge"]           # [H, C]
    w_edge = params["lin_edge_w"]           # [1, H*C]
    bias = params["bias"].reshape(1, hc)

    # Block-diagonal selectors so per-head score reduction becomes a matmul:
    #   Asrc[h*C + c, h] = att_src[h, c]
    eye = jnp.eye(heads, dtype=jnp.float32)
    asrc = (att_src[:, :, None] * eye[:, None, :]).reshape(hc, heads)
    adst = (att_dst[:, :, None] * eye[:, None, :]).reshape(hc, heads)
    # per-head edge coefficient: edge term(i,j,h) = k_edge[h] * eattr[i, j]
    k_edge = (w_edge[0].reshape(heads, out_ch) * att_edge).sum(-1)   # [H]

    vmem = pl.BlockSpec(memory_space=pltpu.MemorySpace.VMEM)
    xw, a_src_t, a_dst = pl.pallas_call(
        _proj_kernel,
        out_shape=(jax.ShapeDtypeStruct((n, hc), jnp.float32),
                   jax.ShapeDtypeStruct((heads, n), jnp.float32),
                   jax.ShapeDtypeStruct((n, heads), jnp.float32)),
        in_specs=[vmem] * 4,
        out_specs=(vmem, vmem, vmem),
    )(x, w, asrc, adst)

    use_atten = eatten_bf is not None
    tile = _pick_tile(n, vmem_cap)
    grid = (pl.cdiv(n, tile),)

    def row_spec(last):
        return pl.BlockSpec((tile, last), lambda i: (i, 0))

    def full_spec(shape):
        return pl.BlockSpec(shape, lambda i: (0, 0))

    in_specs = [
        full_spec((n, hc)),         # xw, resident across tiles
        full_spec((heads, n)),      # a_srcT, resident
        row_spec(heads),            # a_dst tile
        row_spec(n),                # int8 adjacency tile
        row_spec(n),                # bf16 edge-attr tile
    ]
    args = [xw, a_src_t, a_dst, adj_i8, eattr_bf]
    if use_atten:
        in_specs.append(row_spec(n))    # bf16 edge-atten tile (only if given)
        args.append(eatten_bf)
    in_specs.append(pl.BlockSpec(memory_space=pltpu.MemorySpace.SMEM))  # k_edge
    in_specs.append(full_spec((1, hc)))                                 # bias
    args += [k_edge, bias]

    kernel = functools.partial(_attn_kernel, heads=heads, out_ch=out_ch,
                               use_atten=use_atten)
    out, m_stat, s_stat = pl.pallas_call(
        kernel,
        out_shape=(jax.ShapeDtypeStruct((n, hc), jnp.float32),
                   jax.ShapeDtypeStruct((n, heads), jnp.float32),
                   jax.ShapeDtypeStruct((n, heads), jnp.float32)),
        grid_spec=pltpu.PrefetchScalarGridSpec(
            num_scalar_prefetch=0,
            grid=grid,
            in_specs=in_specs,
            out_specs=(row_spec(hc), row_spec(heads), row_spec(heads)),
        ),
        compiler_params=pltpu.CompilerParams(
            dimension_semantics=("parallel",),
            vmem_limit_bytes=_vmem_limit(n, tile, hc, heads, vmem_cap,
                                         use_atten)),
    )(*args)
    return out, a_src_t, a_dst, m_stat, s_stat, k_edge


# --------------------------------------------------------------------------
# Graph densification glue (PyG semantics: add_self_loops, fill_value='mean').
# --------------------------------------------------------------------------
def build_dense(edge_index, edge_attr, num_nodes):
    src, dst = edge_index[0], edge_index[1]
    ea = edge_attr[:, 0].astype(jnp.float32)
    # NOTE: duplicate (src, dst) edges collapse in the dense representation.
    adj = jnp.zeros((num_nodes, num_nodes), jnp.int8).at[dst, src].set(1)
    eattr = jnp.zeros((num_nodes, num_nodes), jnp.float32).at[dst, src].set(ea)
    # self-loops with per-destination mean of incoming edge attrs
    deg = jnp.zeros((num_nodes,), jnp.float32).at[dst].add(1.0)
    ssum = jnp.zeros((num_nodes,), jnp.float32).at[dst].add(ea)
    loop_attr = jnp.where(deg > 0, ssum / jnp.maximum(deg, 1.0), 0.0)
    idx = jnp.arange(num_nodes)
    adj = adj.at[idx, idx].set(1)
    eattr = eattr.at[idx, idx].set(loop_attr)
    return adj, eattr.astype(jnp.bfloat16), loop_attr


def edge_alpha(a_src_t, a_dst, m_stat, s_stat, k_edge, edge_index,
               edge_attr_vec, loop_attr, num_nodes):
    # Per-edge softmax attention (original edges then added self-loops),
    # reconstructed exactly from O(N*H) stats -- no dense [H, N, N] needed.
    # (Returned alpha is the softmax weight before edge_atten scaling, as in
    #  the reference layer's returned attention weights.)
    idx = jnp.arange(num_nodes)
    e_src = jnp.concatenate([edge_index[0], idx])
    e_dst = jnp.concatenate([edge_index[1], idx])
    # Edge attrs travel through the bf16 dense matrix inside the kernel;
    # round-trip here so reconstructed logits match the in-kernel stats.
    e_attr = jnp.concatenate([edge_attr_vec, loop_attr]).astype(
        jnp.bfloat16).astype(jnp.float32)                         # [E+N]
    raw = (a_dst[e_dst] + a_src_t[:, e_src].T) + e_attr[:, None] * k_edge[None, :]
    leak = jnp.maximum(raw, _NEG_SLOPE * raw)
    return jnp.exp(leak - m_stat[e_dst]) / jnp.maximum(s_stat[e_dst], 1e-16)


# --------------------------------------------------------------------------
# gat_ib forward: two stacked GATConv layers, returns (h, weights).
# --------------------------------------------------------------------------
def gat_ib_forward(x, edge_index, batch, params, edge_attr=None,
                   edge_atten=None, heads=(4, 2), out_channels=8):
    del batch  # pool / batch are unused in the reference forward
    n = x.shape[0]
    e = edge_index.shape[1]
    if edge_attr is None:
        edge_attr = jnp.zeros((e, 1), jnp.float32)  # zero edge term == no term
    adj_i8, eattr_bf, loop_attr = build_dense(edge_index, edge_attr, n)
    if edge_atten is None:
        eatten_bf = None   # specialized kernel: no N x N ones matrix streamed
    else:
        eatten_bf = jnp.ones((n, n), jnp.float32).at[
            edge_index[1], edge_index[0]].set(
                edge_atten[:, 0]).astype(jnp.bfloat16)

    vmem_cap = _vmem_capacity()
    h = x
    weights = []
    for num_heads, p in zip(heads, params):
        h, a_src_t, a_dst, m_stat, s_stat, k_edge = gat_conv_layer(
            h, adj_i8, eattr_bf, eatten_bf, p, num_heads, out_channels,
            vmem_cap)
        weights.append(edge_alpha(a_src_t, a_dst, m_stat, s_stat, k_edge,
                                  edge_index, edge_attr[:, 0], loop_attr, n))
    return h, weights


# --------------------------------------------------------------------------
# Deterministic parameter init (shapes follow PyG GATConv with edge_dim=1).
# --------------------------------------------------------------------------
def init_gat_params(key, in_ch, out_ch, heads):
    ks = jax.random.split(key, 5)
    hc = heads * out_ch
    g = lambda k, shape, fan: (jax.random.normal(k, shape, jnp.float32)
                               / math.sqrt(float(fan)))
    return dict(
        lin_w=g(ks[0], (in_ch, hc), in_ch),
        att_src=g(ks[1], (heads, out_ch), out_ch),
        att_dst=g(ks[2], (heads, out_ch), out_ch),
        att_edge=g(ks[3], (heads, out_ch), out_ch),
        lin_edge_w=g(ks[4], (1, hc), 1),
        bias=jnp.zeros((hc,), jnp.float32),
    )


if __name__ == "__main__":
    key = jax.random.PRNGKey(0)
    N, IN_CH, OUT_CH = 16, 8, 8
    HEADS = (4, 2)
    E = 40

    k1, k2, k3, k4, k5 = jax.random.split(key, 5)
    x = jax.random.normal(k1, (N, IN_CH), jnp.float32)
    # unique directed edges, no self-loops (PyG adds self-loops itself)
    pairs = jnp.array([(i, j) for i in range(N) for j in range(N) if i != j],
                      jnp.int32)
    perm = jax.random.permutation(k2, pairs.shape[0])
    edge_index = pairs[perm[:E]].T.astype(jnp.int32)           # [2, E]
    edge_attr = jax.random.uniform(k3, (E, 1), jnp.float32)
    edge_atten = jax.random.uniform(k4, (E, 1), jnp.float32)
    batch = jnp.zeros((N,), jnp.int32)

    params = [
        init_gat_params(jax.random.fold_in(k5, 0), IN_CH, OUT_CH, HEADS[0]),
        init_gat_params(jax.random.fold_in(k5, 1), OUT_CH * HEADS[0], OUT_CH,
                        HEADS[1]),
    ]

    h, weights = gat_ib_forward(x, edge_index, batch, params,
                                edge_attr=edge_attr, heads=HEADS,
                                out_channels=OUT_CH)
    jax.block_until_ready(h)
    for w in weights:
        jax.block_until_ready(w)

    assert h.shape == (N, OUT_CH * HEADS[1])
    assert weights[0].shape == (E + N, HEADS[0])
    assert weights[1].shape == (E + N, HEADS[1])
    assert bool(jnp.all(jnp.isfinite(h)))
    # softmax weights over incoming edges (+ self-loop) of each dst sum to 1
    dsts = jnp.concatenate([edge_index[1], jnp.arange(N, dtype=jnp.int32)])
    for w in weights:
        row_sum = jnp.zeros((N, w.shape[1]), jnp.float32).at[dsts].add(w)
        assert bool(jnp.all(jnp.abs(row_sum - 1.0) < 1e-3))

    # also exercise the edge_atten (masked-graph) kernel specialization
    h2, w2 = gat_ib_forward(x, edge_index, batch, params,
                            edge_attr=edge_attr, edge_atten=edge_atten,
                            heads=HEADS, out_channels=OUT_CH)
    jax.block_until_ready(h2)
    assert bool(jnp.all(jnp.isfinite(h2)))

    print("KERNEL_OK")
</pallas_src>

<mosaic_0001>
module attributes {stable_mosaic.version = 11 : i64} {
  func.func @_proj_kernel(%arg0: memref<16x8xf32, #tpu.memory_space<vmem>>, %arg1: memref<8x32xf32, #tpu.memory_space<vmem>>, %arg2: memref<32x4xf32, #tpu.memory_space<vmem>>, %arg3: memref<32x4xf32, #tpu.memory_space<vmem>>, %arg4: memref<16x32xf32, #tpu.memory_space<vmem>>, %arg5: memref<4x16xf32, #tpu.memory_space<vmem>>, %arg6: memref<16x4xf32, #tpu.memory_space<vmem>>) attributes {dimension_semantics = [], scalar_prefetch = 0 : i64, scratch_operands = 0 : i64, tpu.core_type = #tpu.core_type<tc>} {
    %c0 = arith.constant 0 : index
    %c0_0 = arith.constant 0 : index
    %0 = vector.load %arg0[%c0, %c0_0] : memref<16x8xf32, #tpu.memory_space<vmem>>, vector<16x8xf32>
    %c0_1 = arith.constant 0 : index
    %c0_2 = arith.constant 0 : index
    %1 = vector.load %arg1[%c0_1, %c0_2] : memref<8x32xf32, #tpu.memory_space<vmem>>, vector<8x32xf32>
    %cst = arith.constant dense<0.000000e+00> : vector<16x32xf32>
    %2 = tpu.matmul %0, %1, %cst {dimension_numbers = #tpu.dot_dimension_numbers<[1], [0], [0], [1], [0, 0, 1, 1], [], []>} : vector<16x8xf32>, vector<8x32xf32>, vector<16x32xf32> -> vector<16x32xf32>
    %c0_3 = arith.constant 0 : index
    %c0_4 = arith.constant 0 : index
    %3 = vector.load %arg4[%c0_3, %c0_4] : memref<16x32xf32, #tpu.memory_space<vmem>>, vector<16x32xf32>
    tpu.vector_store %arg4[%c0_3, %c0_4], %2 {strides = array<i32>} : memref<16x32xf32, #tpu.memory_space<vmem>>, vector<16x32xf32>,
    %c0_5 = arith.constant 0 : index
    %c0_6 = arith.constant 0 : index
    %4 = vector.load %arg2[%c0_5, %c0_6] : memref<32x4xf32, #tpu.memory_space<vmem>>, vector<32x4xf32>
    %cst_7 = arith.constant dense<0.000000e+00> : vector<4x16xf32>
    %5 = tpu.matmul %4, %2, %cst_7 {dimension_numbers = #tpu.dot_dimension_numbers<[0], [1], [1], [0], [0, 1, 1, 0], [], []>} : vector<32x4xf32>, vector<16x32xf32>, vector<4x16xf32> -> vector<4x16xf32>
    %c0_8 = arith.constant 0 : index
    %c0_9 = arith.constant 0 : index
    %6 = vector.load %arg5[%c0_8, %c0_9] : memref<4x16xf32, #tpu.memory_space<vmem>>, vector<4x16xf32>
    tpu.vector_store %arg5[%c0_8, %c0_9], %5 {strides = array<i32>} : memref<4x16xf32, #tpu.memory_space<vmem>>, vector<4x16xf32>,
    %c0_10 = arith.constant 0 : index
    %c0_11 = arith.constant 0 : index
    %7 = vector.load %arg3[%c0_10, %c0_11] : memref<32x4xf32, #tpu.memory_space<vmem>>, vector<32x4xf32>
    %cst_12 = arith.constant dense<0.000000e+00> : vector<16x4xf32>
    %8 = tpu.matmul %2, %7, %cst_12 {dimension_numbers = #tpu.dot_dimension_numbers<[1], [0], [0], [1], [0, 0, 1, 1], [], []>} : vector<16x32xf32>, vector<32x4xf32>, vector<16x4xf32> -> vector<16x4xf32>
    %c0_13 = arith.constant 0 : index
    %c0_14 = arith.constant 0 : index
    %9 = vector.load %arg6[%c0_13, %c0_14] : memref<16x4xf32, #tpu.memory_space<vmem>>, vector<16x4xf32>
    tpu.vector_store %arg6[%c0_13, %c0_14], %8 {strides = array<i32>} : memref<16x4xf32, #tpu.memory_space<vmem>>, vector<16x4xf32>,
    return
  }
}

</mosaic_0001>

<llo_original>
// kernel: tpu_custom_call.1
$region0: #{tpu_custom_call.1}
  #allocation0 [shape = 'u32[]', space=smem, size = 0x4, offset = 0x4, fixed_abs, tag = 'smem constant byte address 0x4 - core index']
  #allocation1 [shape = 'u32[144,128]{1,0:T(1,128)}', space=vmem, size = 0x12000, scoped, tag = 'internal scratch']
  %s0 = inlined_call_operand.vmem [shape: f32[16,8], index: 0, kind: input, shape index: {}]
  %s1 = inlined_call_operand.vmem [shape: f32[8,32], index: 1, kind: input, shape index: {}]
  %s2 = inlined_call_operand.vmem [shape: f32[32,4], index: 2, kind: input, shape index: {}]
  %s3 = inlined_call_operand.vmem [shape: f32[32,4], index: 3, kind: input, shape index: {}]
  %s4 = inlined_call_operand.hbm [shape: f32[16,32], index: 4, kind: output, shape index: {0}]
  %s5 = inlined_call_operand.hbm [shape: f32[4,16], index: 5, kind: output, shape index: {1}]
  %s6 = inlined_call_operand.vmem [shape: f32[16,4], index: 6, kind: output, shape index: {2}]
  %7 = xla_tuple %s4, %s5, %s6
  %s8 = sld [smem:[#allocation0]]
  $region42: #{tpu_custom_call.1} parent=0
    _
  %s10 = ssub.s32 1, %s8
  %s11 = scalar_select 0, %s10, %s8
  $region1: #{tpu_custom_call.1} parent=0
    #allocation2 [shape = 'u8[8192]{0}', space=vmem, size = 0x2000, scoped, tag = 'output window, operand 0, single buffered']
    #allocation3 [shape = 's32[1]{0}', space=sflag, size = 0x4, scoped, tag = 'scoped memory for tpu_custom_call.1']
    #allocation4 [shape = 'u8[2048]{0}', space=vmem, size = 0x800, scoped, tag = 'output window, operand 1, single buffered']
    #allocation5 [shape = 's32[1]{0}', space=sflag, size = 0x4, scoped, tag = 'scoped memory for tpu_custom_call.1']
    %12 = vsyncpa [#allocation3], 0
    %13 = vsyncpa [#allocation5], 0
    // Predicated region
    $region2: #{tpu_custom_call.1} parent=1 // pred_check
      _
    $region3: #{tpu_custom_call.1} parent=1 // pred_check_branch
      %15 = sbr.rel (0) target = $region5
    $region4: #{tpu_custom_call.1} parent=1 // pred_region
      _
    $region5: #{tpu_custom_call.1} parent=1 // pred_fallthru
      _
    // Predicated region
    $region6: #{tpu_custom_call.1} parent=1 // pred_check
      _
    $region7: #{tpu_custom_call.1} parent=1 // pred_check_branch
      %17 = sbr.rel (0) target = $region9
    $region8: #{tpu_custom_call.1} parent=1 // pred_region
      _
    $region9: #{tpu_custom_call.1} parent=1 // pred_fallthru
      _
    // Predicated region
    $region10: #{tpu_custom_call.1} parent=1 // pred_check
      _
    $region11: #{tpu_custom_call.1} parent=1 // pred_check_branch
      %19 = sbr.rel (0) target = $region13
    $region12: #{tpu_custom_call.1} parent=1 // pred_region
      _
    $region13: #{tpu_custom_call.1} parent=1 // pred_fallthru
      _
    // Predicated region
    $region14: #{tpu_custom_call.1} parent=1 // pred_check
      _
    $region15: #{tpu_custom_call.1} parent=1 // pred_check_branch
      %21 = sbr.rel (0) target = $region17
    $region16: #{tpu_custom_call.1} parent=1 // pred_region
      _
    $region17: #{tpu_custom_call.1} parent=1 // pred_fallthru
      _
    %v22 = vld [vmem:[%s0] sm:$0xff]
    %v23 = vld [vmem:[%s0 + $0x8] sm:$0xff]
    %v24 = vld [vmem:[%s1] sm:$0xff]
    %vm25 = vcmask 64512
    %v27 = vsel %vm25, %v22, 0
    %v30 = vsel %vm25, %v23, 0
    %32 = vmatprep.subr.mxu0 0.0
    %33 = vmatpush1.msra.mxu0 0.0
    %34 = vmatprep.subr.mxu0 0.0
    %35 = vmatpush1.msra.mxu0 0.0
    %36 = vmatprep.subr.mxu0 0.0
    %37 = vmatpush1.msra.mxu0 0.0
    %38 = vmatprep.subr.mxu0 0.0
    %39 = vmatpush1.msra.mxu0 0.0
    %40 = vmatprep.subr.mxu0 0.0
    %41 = vmatpush1.msra.mxu0 0.0
    %42 = vmatprep.subr.mxu0 0.0
    %43 = vmatpush1.msra.mxu0 0.0
    %44 = vmatprep.subr.mxu0 0.0
    %45 = vmatpush1.msra.mxu0 0.0
    %46 = vmatprep.subr.mxu0 0.0
    %47 = vmatpush1.msra.mxu0 0.0
    %48 = vmatprep.subr.mxu0 0.0
    %49 = vmatpush1.msra.mxu0 0.0
    %50 = vmatprep.subr.mxu0 0.0
    %51 = vmatpush1.msra.mxu0 0.0
    %52 = vmatprep.subr.mxu0 0.0
    %53 = vmatpush1.msra.mxu0 0.0
    %54 = vmatprep.subr.mxu0 0.0
    %55 = vmatpush1.msra.mxu0 0.0
    %56 = vmatprep.subr.mxu0 0.0
    %57 = vmatpush1.msra.mxu0 0.0
    %58 = vmatprep.subr.mxu0 0.0
    %59 = vmatpush1.msra.mxu0 0.0
    %60 = vmatprep.subr.mxu0 0.0
    %61 = vmatpush1.msra.mxu0 0.0
    %62 = vmatprep.subr.mxu0 0.0
    %63 = vmatpush1.msra.mxu0 %v24
    %64 = vmatprep.subr.mxu0 0.0
    %65 = vmatpush2.msra.mxu0 0.0
    %66 = vmatprep.subr.mxu0 0.0
    %67 = vmatpush2.msra.mxu0 0.0
    %68 = vmatprep.subr.mxu0 0.0
    %69 = vmatpush2.msra.mxu0 0.0
    %70 = vmatprep.subr.mxu0 0.0
    %71 = vmatpush2.msra.mxu0 0.0
    %72 = vmatprep.subr.mxu0 0.0
    %73 = vmatpush2.msra.mxu0 0.0
    %74 = vmatprep.subr.mxu0 0.0
    %75 = vmatpush2.msra.mxu0 0.0
    %76 = vmatprep.subr.mxu0 0.0
    %77 = vmatpush2.msra.mxu0 0.0
    %78 = vmatprep.subr.mxu0 0.0
    %79 = vmatpush2.msra.mxu0 0.0
    %80 = vmatprep.subr.mxu0 0.0
    %81 = vmatpush2.msra.mxu0 0.0
    %82 = vmatprep.subr.mxu0 0.0
    %83 = vmatpush2.msra.mxu0 0.0
    %84 = vmatprep.subr.mxu0 0.0
    %85 = vmatpush2.msra.mxu0 0.0
    %86 = vmatprep.subr.mxu0 0.0
    %87 = vmatpush2.msra.mxu0 0.0
    %88 = vmatprep.subr.mxu0 0.0
    %89 = vmatpush2.msra.mxu0 0.0
    %90 = vmatprep.subr.mxu0 0.0
    %91 = vmatpush2.msra.mxu0 0.0
    %92 = vmatprep.subr.mxu0 0.0
    %93 = vmatpush2.msra.mxu0 0.0
    %94 = vmatprep.subr.mxu0 0.0
    %95 = vmatpush2.msra.mxu0 0.0
    %96 = vmatprep.mubr.f32.mxu0 0.0
    %97 = vmatmul.mubr.f32.gmra.mxu0 %v27
    %v98 = vpop.f32.mrf.mxu0
    %v99 = vadd.f32 0.0, %v98
    %v100 = vpop.f32.mrf.mxu0
    %101 = vmatprep.mubr.f32.mxu0 0.0
    %102 = vmatmul.mubr.f32.gmra.mxu0 %v30
    %v103 = vpop.f32.mrf.mxu0
    %v104 = vadd.f32 0.0, %v103
    %v105 = vpop.f32.mrf.mxu0
    %106 = vdwg.mxu0
    %vm107 = vcmask 261120
    %108 = vst.msk [vmem:[#allocation2] sm:$0xff] %vm107, %v99
    %109 = vst.msk [vmem:[#allocation2 + $0x8] sm:$0xff] %vm107, %v104
    %v110 = vld [vmem:[%s2] sm:$0xff]
    %v111 = vld [vmem:[%s2 + $0x8] sm:$0xff]
    %v112 = vld [vmem:[%s2 + $0x10] sm:$0xff]
    %v113 = vld [vmem:[%s2 + $0x18] sm:$0xff]
    %114 = vxpose.xlu0.b32.start [1/16] %v110, 128
    %115 = vxpose.xlu0.b32.cont [2/16] %v111, 128
    %116 = vxpose.xlu0.b32.cont [3/16] %v112, 128
    %117 = vxpose.xlu0.b32.cont [4/16] %v113, 128
    %118 = vxpose.xlu0.b32.cont [5/16] 0.0, 128
    %119 = vxpose.xlu0.b32.cont [6/16] 0.0, 128
    %120 = vxpose.xlu0.b32.cont [7/16] 0.0, 128
    %121 = vxpose.xlu0.b32.cont [8/16] 0.0, 128
    %122 = vxpose.xlu0.b32.cont [9/16] 0.0, 128
    %123 = vxpose.xlu0.b32.cont [10/16] 0.0, 128
    %124 = vxpose.xlu0.b32.cont [11/16] 0.0, 128
    %125 = vxpose.xlu0.b32.cont [12/16] 0.0, 128
    %126 = vxpose.xlu0.b32.cont [13/16] 0.0, 128
    %127 = vxpose.xlu0.b32.cont [14/16] 0.0, 128
    %128 = vxpose.xlu0.b32.cont [15/16] 0.0, 128
    %129 = vxpose.xlu0.b32.end [16/16] 0.0, 128
    %v130 = vpop.trf.xlu0
    %v131 = vpop.trf.xlu0
    %v132 = vpop.trf.xlu0
    %v133 = vpop.trf.xlu0
    %v134 = vpop.trf.xlu0
    %v135 = vpop.trf.xlu0
    %v136 = vpop.trf.xlu0
    %v137 = vpop.trf.xlu0
    %v138 = vpop.trf.xlu0
    %v139 = vpop.trf.xlu0
    %v140 = vpop.trf.xlu0
    %v141 = vpop.trf.xlu0
    %v142 = vpop.trf.xlu0
    %v143 = vpop.trf.xlu0
    %v144 = vpop.trf.xlu0
    %v145 = vpop.trf.xlu0
    %v147 = vsel %vm107, %v130, 0
    %v150 = vsel %vm107, %v99, 0
    %v153 = vsel %vm107, %v104, 0
    %155 = vmatprep.subr.mxu0 0.0
    %156 = vmatpush1.xpose.msra.mxu0 0.0
    %157 = vmatprep.subr.mxu0 0.0
    %158 = vmatpush1.xpose.msra.mxu0 0.0
    %159 = vmatprep.subr.mxu0 0.0
    %160 = vmatpush1.xpose.msra.mxu0 0.0
    %161 = vmatprep.subr.mxu0 0.0
    %162 = vmatpush1.xpose.msra.mxu0 0.0
    %163 = vmatprep.subr.mxu0 0.0
    %164 = vmatpush1.xpose.msra.mxu0 0.0
    %165 = vmatprep.subr.mxu0 0.0
    %166 = vmatpush1.xpose.msra.mxu0 0.0
    %167 = vmatprep.subr.mxu0 0.0
    %168 = vmatpush1.xpose.msra.mxu0 0.0
    %169 = vmatprep.subr.mxu0 0.0
    %170 = vmatpush1.xpose.msra.mxu0 0.0
    %171 = vmatprep.subr.mxu0 0.0
    %172 = vmatpush1.xpose.msra.mxu0 0.0
    %173 = vmatprep.subr.mxu0 0.0
    %174 = vmatpush1.xpose.msra.mxu0 0.0
    %175 = vmatprep.subr.mxu0 0.0
    %176 = vmatpush1.xpose.msra.mxu0 0.0
    %177 = vmatprep.subr.mxu0 0.0
    %178 = vmatpush1.xpose.msra.mxu0 0.0
    %179 = vmatprep.subr.mxu0 0.0
    %180 = vmatpush1.xpose.msra.mxu0 0.0
    %181 = vmatprep.subr.mxu0 0.0
    %182 = vmatpush1.xpose.msra.mxu0 0.0
    %183 = vmatprep.subr.mxu0 0.0
    %184 = vmatpush1.xpose.msra.mxu0 %v153
    %185 = vmatprep.subr.mxu0 0.0
    %186 = vmatpush1.xpose.msra.mxu0 %v150
    %187 = vmatprep.subr.mxu0 0.0
    %188 = vmatpush2.xpose.msra.mxu0 0.0
    %189 = vmatprep.subr.mxu0 0.0
    %190 = vmatpush2.xpose.msra.mxu0 0.0
    %191 = vmatprep.subr.mxu0 0.0
    %192 = vmatpush2.xpose.msra.mxu0 0.0
    %193 = vmatprep.subr.mxu0 0.0
    %194 = vmatpush2.xpose.msra.mxu0 0.0
    %195 = vmatprep.subr.mxu0 0.0
    %196 = vmatpush2.xpose.msra.mxu0 0.0
    %197 = vmatprep.subr.mxu0 0.0
    %198 = vmatpush2.xpose.msra.mxu0 0.0
    %199 = vmatprep.subr.mxu0 0.0
    %200 = vmatpush2.xpose.msra.mxu0 0.0
    %201 = vmatprep.subr.mxu0 0.0
    %202 = vmatpush2.xpose.msra.mxu0 0.0
    %203 = vmatprep.subr.mxu0 0.0
    %204 = vmatpush2.xpose.msra.mxu0 0.0
    %205 = vmatprep.subr.mxu0 0.0
    %206 = vmatpush2.xpose.msra.mxu0 0.0
    %207 = vmatprep.subr.mxu0 0.0
    %208 = vmatpush2.xpose.msra.mxu0 0.0
    %209 = vmatprep.subr.mxu0 0.0
    %210 = vmatpush2.xpose.msra.mxu0 0.0
    %211 = vmatprep.subr.mxu0 0.0
    %212 = vmatpush2.xpose.msra.mxu0 0.0
    %213 = vmatprep.subr.mxu0 0.0
    %214 = vmatpush2.xpose.msra.mxu0 0.0
    %215 = vmatprep.subr.mxu0 0.0
    %216 = vmatpush2.xpose.msra.mxu0 0.0
    %217 = vmatprep.subr.mxu0 0.0
    %218 = vmatpush2.xpose.msra.mxu0 0.0
    %219 = vmatprep.mubr.f32.mxu0 0.0
    %220 = vmatmul.mubr.f32.gmra.mxu0 %v147
    %v221 = vpop.f32.mrf.mxu0
    %v222 = vadd.f32 0.0, %v221
    %v223 = vpop.f32.mrf.mxu0
    %224 = vdwg.mxu0
    %vm225 = vcmask 125952
    %226 = vst.msk [vmem:[#allocation4] sm:$0xf] %vm225, %v222
    %v227 = vld [vmem:[%s3] sm:$0xff]
    %v228 = vld [vmem:[%s3 + $0x8] sm:$0xff]
    %v229 = vld [vmem:[%s3 + $0x10] sm:$0xff]
    %v230 = vld [vmem:[%s3 + $0x18] sm:$0xff]
    %231 = vmatprep.subr.mxu0 0.0
    %232 = vmatpush1.msra.mxu0 0.0
    %233 = vmatprep.subr.mxu0 0.0
    %234 = vmatpush1.msra.mxu0 0.0
    %235 = vmatprep.subr.mxu0 0.0
    %236 = vmatpush1.msra.mxu0 0.0
    %237 = vmatprep.subr.mxu0 0.0
    %238 = vmatpush1.msra.mxu0 0.0
    %239 = vmatprep.subr.mxu0 0.0
    %240 = vmatpush1.msra.mxu0 0.0
    %241 = vmatprep.subr.mxu0 0.0
    %242 = vmatpush1.msra.mxu0 0.0
    %243 = vmatprep.subr.mxu0 0.0
    %244 = vmatpush1.msra.mxu0 0.0
    %245 = vmatprep.subr.mxu0 0.0
    %246 = vmatpush1.msra.mxu0 0.0
    %247 = vmatprep.subr.mxu0 0.0
    %248 = vmatpush1.msra.mxu0 0.0
    %249 = vmatprep.subr.mxu0 0.0
    %250 = vmatpush1.msra.mxu0 0.0
    %251 = vmatprep.subr.mxu0 0.0
    %252 = vmatpush1.msra.mxu0 0.0
    %253 = vmatprep.subr.mxu0 0.0
    %254 = vmatpush1.msra.mxu0 0.0
    %255 = vmatprep.subr.mxu0 0.0
    %256 = vmatpush1.msra.mxu0 %v230
    %257 = vmatprep.subr.mxu0 0.0
    %258 = vmatpush1.msra.mxu0 %v229
    %259 = vmatprep.subr.mxu0 0.0
    %260 = vmatpush1.msra.mxu0 %v228
    %261 = vmatprep.subr.mxu0 0.0
    %262 = vmatpush1.msra.mxu0 %v227
    %263 = vmatprep.subr.mxu0 0.0
    %264 = vmatpush2.msra.mxu0 0.0
    %265 = vmatprep.subr.mxu0 0.0
    %266 = vmatpush2.msra.mxu0 0.0
    %267 = vmatprep.subr.mxu0 0.0
    %268 = vmatpush2.msra.mxu0 0.0
    %269 = vmatprep.subr.mxu0 0.0
    %270 = vmatpush2.msra.mxu0 0.0
    %271 = vmatprep.subr.mxu0 0.0
    %272 = vmatpush2.msra.mxu0 0.0
    %273 = vmatprep.subr.mxu0 0.0
    %274 = vmatpush2.msra.mxu0 0.0
    %275 = vmatprep.subr.mxu0 0.0
    %276 = vmatpush2.msra.mxu0 0.0
    %277 = vmatprep.subr.mxu0 0.0
    %278 = vmatpush2.msra.mxu0 0.0
    %279 = vmatprep.subr.mxu0 0.0
    %280 = vmatpush2.msra.mxu0 0.0
    %281 = vmatprep.subr.mxu0 0.0
    %282 = vmatpush2.msra.mxu0 0.0
    %283 = vmatprep.subr.mxu0 0.0
    %284 = vmatpush2.msra.mxu0 0.0
    %285 = vmatprep.subr.mxu0 0.0
    %286 = vmatpush2.msra.mxu0 0.0
    %287 = vmatprep.subr.mxu0 0.0
    %288 = vmatpush2.msra.mxu0 0.0
    %289 = vmatprep.subr.mxu0 0.0
    %290 = vmatpush2.msra.mxu0 0.0
    %291 = vmatprep.subr.mxu0 0.0
    %292 = vmatpush2.msra.mxu0 0.0
    %293 = vmatprep.subr.mxu0 0.0
    %294 = vmatpush2.msra.mxu0 0.0
    %295 = vmatprep.mubr.f32.mxu0 0.0
    %296 = vmatmul.mubr.f32.gmra.mxu0 %v150
    %v297 = vpop.f32.mrf.mxu0
    %v298 = vadd.f32 0.0, %v297
    %v299 = vpop.f32.mrf.mxu0
    %300 = vmatprep.mubr.f32.mxu0 0.0
    %301 = vmatmul.mubr.f32.gmra.mxu0 %v153
    %v302 = vpop.f32.mrf.mxu0
    %v303 = vadd.f32 0.0, %v302
    %v304 = vpop.f32.mrf.mxu0
    %305 = vdwg.mxu0
    %vm306 = vcmask 31744
    %307 = vst.msk [vmem:[%s6] sm:$0xff] %vm306, %v298
    %308 = vst.msk [vmem:[%s6 + $0x8] sm:$0xff] %vm306, %v303
    // Predicated region
    $region18: #{tpu_custom_call.1} parent=1 // pred_check
      _
    $region19: #{tpu_custom_call.1} parent=1 // pred_check_branch
      %310 = sbr.rel (0) target = $region21
    $region20: #{tpu_custom_call.1} parent=1 // pred_region
      %s312 = ssub.s32 256, 256
      %313 = vsyncadd [#allocation3], %s312
      %s314 = sshll.u32 [#allocation2], 4
      %s315 = int_to_ptr.vmem [resolvable:$true] %s314
      %320 = dma.vmem_to_hbm [thread:$0]  %s315, 256, %s4, [#allocation3], 128, 128, 8
    $region21: #{tpu_custom_call.1} parent=1 // pred_fallthru
      _
    // Predicated region
    $region22: #{tpu_custom_call.1} parent=1 // pred_check
      _
    $region23: #{tpu_custom_call.1} parent=1 // pred_check_branch
      %322 = sbr.rel (0) target = $region25
    $region24: #{tpu_custom_call.1} parent=1 // pred_region
      %s324 = ssub.s32 64, 64
      %325 = vsyncadd [#allocation5], %s324
      %s327 = sshll.u32 [#allocation4], 4
      %s328 = int_to_ptr.vmem [resolvable:$true] %s327
      %330 = dma.vmem_to_hbm [thread:$0]  %s328, 64, %s5, [#allocation5]
    $region25: #{tpu_custom_call.1} parent=1 // pred_fallthru
      _
    // Predicated region
    $region26: #{tpu_custom_call.1} parent=1 // pred_check
      _
    $region27: #{tpu_custom_call.1} parent=1 // pred_check_branch
      %332 = sbr.rel (0) target = $region29
    $region28: #{tpu_custom_call.1} parent=1 // pred_region
      _
    $region29: #{tpu_custom_call.1} parent=1 // pred_fallthru
      _
    // Predicated region
    $region30: #{tpu_custom_call.1} parent=1 // pred_check
      _
    $region31: #{tpu_custom_call.1} parent=1 // pred_check_branch
      %334 = sbr.rel (0) target = $region33
    $region32: #{tpu_custom_call.1} parent=1 // pred_region
      %335 = dma.done [#allocation3], 256
    $region33: #{tpu_custom_call.1} parent=1 // pred_fallthru
      _
    // Predicated region
    $region34: #{tpu_custom_call.1} parent=1 // pred_check
      _
    $region35: #{tpu_custom_call.1} parent=1 // pred_check_branch
      %337 = sbr.rel (0) target = $region37
    $region36: #{tpu_custom_call.1} parent=1 // pred_region
      %338 = dma.done [#allocation5], 64
    $region37: #{tpu_custom_call.1} parent=1 // pred_fallthru
      _
    // Predicated region
    $region38: #{tpu_custom_call.1} parent=1 // pred_check
      _
    $region39: #{tpu_custom_call.1} parent=1 // pred_check_branch
      %340 = sbr.rel (0) target = $region41
    $region40: #{tpu_custom_call.1} parent=1 // pred_region
      _
    $region41: #{tpu_custom_call.1} parent=1 // pred_fallthru
      _
    %341 = vsyncpa [#allocation3], 1
    %342 = vsyncpa [#allocation5], 1

</llo_original>
